<compile_context>
chip_gen: v6e
topology: v6e:2x2x1
jax: 0.10.0
libtpu: 0.0.40
codegen_flags: <defaults>
</compile_context>

<pallas_src>
import jax
import jax.numpy as jnp
from jax.experimental import pallas as pl
from jax.experimental.pallas import tpu as pltpu


def _cdiv(a: int, b: int) -> int:
    return -(-a // b)


def _adaptive_windows(L: int, out_size: int):
    """Static adaptive-pool windows, identical to PyTorch's start/end formula."""
    wins = []
    for i in range(out_size):
        s = (i * L) // out_size
        e = -((-(i + 1) * L) // out_size)  # ceil((i+1)*L/out)
        wins.append((s, e))
    return wins


def _vmem_capacity_bytes() -> int:
    try:
        return int(pltpu.get_tpu_info().vmem_capacity_bytes)
    except Exception:
        return 64 << 20  # conservative (v7x-sized) fallback


def _make_kernel(L: int, out_size: int, lane_dense: bool):
    windows = _adaptive_windows(L, out_size)
    uniform = (L % out_size == 0)
    seg = L // out_size

    def kernel(x_ref, out1_ref, idx7_ref):
        x = x_ref[...]                       # (rows, L)
        rows = x.shape[0]

        if uniform:
            # Uniform windows: single reshaped reduction pass.
            xr = x.reshape(rows, out_size, seg)                     # (R, 7, seg)
            m7 = jnp.max(xr, axis=-1)                               # (R, 7)
            iota = jax.lax.broadcasted_iota(jnp.int32, (1, 1, seg), 2)
            # sentinel = seg-1 keeps the index in range even for NaN windows
            cand = jnp.where(xr == m7[..., None], iota, jnp.int32(seg - 1))
            local = jnp.min(cand, axis=-1)                          # first max
            base = jax.lax.broadcasted_iota(jnp.int32, (1, out_size), 1) * seg
            idx7 = local + base                                     # (R, 7)
        else:
            # Ragged windows: unrolled static slices, small per-window iota.
            m_cols, i_cols = [], []
            for (s, e) in windows:
                w = x[:, s:e]                                       # (R, e-s)
                m = jnp.max(w, axis=1, keepdims=True)               # (R, 1)
                iw = jax.lax.broadcasted_iota(jnp.int32, (1, e - s), 1) + s
                # sentinel = e-1 keeps the index in range even for NaN windows
                cand = jnp.where(w == m, iw, jnp.int32(e - 1))
                i_cols.append(jnp.min(cand, axis=1, keepdims=True))  # first max
                m_cols.append(m)
            m7 = jnp.concatenate(m_cols, axis=1)                    # (R, 7)
            idx7 = jnp.concatenate(i_cols, axis=1)                  # (R, 7)

        if lane_dense:
            # Lane-dense stores: (7, rows) / (1, rows); transpose uses the XLU.
            idx7_ref[...] = idx7.T
            out1_ref[...] = jnp.max(m7.T, axis=0, keepdims=True)
        else:
            idx7_ref[...] = idx7
            out1_ref[...] = jnp.max(m7, axis=1, keepdims=True)

    return kernel


def adaptive_max_pool1d_model(x: jax.Array, out_size: int = 7):
    """x: (N, C, L) float.

    Returns:
      pooled1: (N, C, 1)              -- adaptive_max_pool1d(adaptive_max_pool1d(x, 7), 1)
      indices: (N, C, out_size) int32 -- indices from the first pool
    """
    N, C, L = x.shape
    R = N * C
    x2d = x.reshape(R, L)                   # no-op view, no HBM copy

    # ---- Per-chip VMEM budgets (input tile is double-buffered and the kernel
    # holds ~2 more tile-sized f32/i32 temporaries -> peak ~= 4 x tile).
    vmem_cap = _vmem_capacity_bytes()
    big_vmem = vmem_cap >= (96 << 20)       # v5e / v6e (128 MiB physical)
    per_buffer_budget = (12 << 20) if big_vmem else (6 << 20)
    vmem_limit_cap = (64 << 20) if big_vmem else (48 << 20)

    in_row_bytes = L * 4
    rows_fit = max(1, per_buffer_budget // in_row_bytes)

    if rows_fit >= R and R < 256:
        # Everything fits in one small block.
        TILE_R = R
    elif rows_fit >= 128:
        # Multiple-of-128 tile from the byte budget, capped at ~R/2 so the
        # "parallel" grid axis has >=2 steps (both v7x TensorCores busy).
        TILE_R = max(128, (min(rows_fit, _cdiv(R, 2)) // 128) * 128)
        TILE_R = min(TILE_R, R)
    else:
        # TODO(synk): add an L-axis ("arbitrary") grid with running-max/first-index
        # scratch for very long L instead of narrow 8-row tiles.
        TILE_R = min(R, max(8, (rows_fit // 8) * 8))

    lane_dense = (TILE_R == R) or (TILE_R % 128 == 0)
    grid = (pl.cdiv(R, TILE_R),)            # partial last block handled by Pallas masking

    tile_in_bytes = TILE_R * in_row_bytes
    out_bytes = 2 * TILE_R * (out_size + 1) * 4
    vmem_need = 4 * tile_in_bytes + out_bytes + (4 << 20)
    vmem_limit = int(min(max(vmem_need, 32 << 20), vmem_limit_cap))
    if vmem_need > vmem_limit_cap:
        # very-long-L fallback: allow the scoped limit to grow toward physical VMEM
        vmem_limit = int(min(vmem_need, (vmem_cap * 9) // 10))

    kernel = _make_kernel(L, out_size, lane_dense)

    if lane_dense:
        out_shape = (
            jax.ShapeDtypeStruct((1, R), x.dtype),
            jax.ShapeDtypeStruct((out_size, R), jnp.int32),
        )
        out_specs = (
            pl.BlockSpec((1, TILE_R), lambda i: (0, i)),
            pl.BlockSpec((out_size, TILE_R), lambda i: (0, i)),
        )
    else:
        out_shape = (
            jax.ShapeDtypeStruct((R, 1), x.dtype),
            jax.ShapeDtypeStruct((R, out_size), jnp.int32),
        )
        out_specs = (
            pl.BlockSpec((TILE_R, 1), lambda i: (i, 0)),
            pl.BlockSpec((TILE_R, out_size), lambda i: (i, 0)),
        )

    out1, idx7 = pl.pallas_call(
        kernel,
        out_shape=out_shape,
        grid=grid,
        in_specs=[pl.BlockSpec((TILE_R, L), lambda i: (i, 0))],
        out_specs=out_specs,
        compiler_params=pltpu.CompilerParams(
            dimension_semantics=("parallel",),
            vmem_limit_bytes=vmem_limit,
        ),
    )(x2d)

    if lane_dense:
        pooled1 = out1.reshape(N, C, 1)                 # (1, R) -> (N, C, 1)
        indices = idx7.T.reshape(N, C, out_size)        # (7, R) -> (N, C, 7)
    else:
        pooled1 = out1.reshape(N, C, 1)
        indices = idx7.reshape(N, C, out_size)
    return pooled1, indices


def _reference(x, out_size=7):
    # pure-JAX reference for sanity checking
    wins = _adaptive_windows(x.shape[-1], out_size)
    outs, idxs = [], []
    for (s, e) in wins:
        w = x[:, :, s:e]
        outs.append(jnp.max(w, axis=-1, keepdims=True))
        idxs.append(jnp.argmax(w, axis=-1, keepdims=True).astype(jnp.int32) + s)
    out7 = jnp.concatenate(outs, axis=-1)
    idx7 = jnp.concatenate(idxs, axis=-1)
    out1 = jnp.max(out7, axis=-1, keepdims=True)
    return out1, idx7


if __name__ == "__main__":
    key = jax.random.PRNGKey(0)
    N, C, L = 2, 4, 16  # small shapes consistent with the (N, C, L) forward
    x = jax.random.uniform(key, (N, C, L), dtype=jnp.float32)

    pooled1, indices = adaptive_max_pool1d_model(x, out_size=7)
    pooled1 = jax.block_until_ready(pooled1)
    indices = jax.block_until_ready(indices)

    ref1, ref_idx = _reference(x, out_size=7)
    assert pooled1.shape == (N, C, 1)
    assert indices.shape == (N, C, 7)
    assert jnp.allclose(pooled1, ref1), "max values mismatch"
    assert jnp.array_equal(indices, ref_idx), "indices mismatch"

    print("KERNEL_OK")
</pallas_src>

<mosaic_0001>
module attributes {stable_mosaic.version = 11 : i64} {
  func.func @kernel(%arg0: i32, %arg1: memref<8x16xf32, #tpu.memory_space<vmem>>, %arg2: memref<1x8xf32, #tpu.memory_space<vmem>>, %arg3: memref<7x8xi32, #tpu.memory_space<vmem>>) attributes {dimension_semantics = [#tpu.dimension_semantics<parallel>], iteration_bounds = array<i64: 1>, scalar_prefetch = 0 : i64, scratch_operands = 0 : i64, tpu.core_type = #tpu.core_type<tc>, window_params = [{transform_indices = @transform_0, window_bounds = array<i64: 8, 16>}, {transform_indices = @transform_1, window_bounds = array<i64: 1, 8>}, {transform_indices = @transform_2, window_bounds = array<i64: 7, 8>}]} {
    %c0 = arith.constant 0 : index
    %c0_0 = arith.constant 0 : index
    %0 = vector.load %arg1[%c0, %c0_0] : memref<8x16xf32, #tpu.memory_space<vmem>>, vector<8x16xf32>
    %1 = vector.extract_strided_slice %0 {offsets = [0, 0], sizes = [8, 3], strides = [1, 1]} : vector<8x16xf32> to vector<8x3xf32>
    %cst = arith.constant dense<0xFF800000> : vector<8xf32>
    %2 = vector.multi_reduction <maximumf>, %1, %cst [1] : vector<8x3xf32> to vector<8xf32>
    %3 = vector.shape_cast %2 : vector<8xf32> to vector<8x1xf32>
    %4 = tpu.iota {dimensions = array<i32: 1>} : vector<1x3xi32>
    %c0_i32 = arith.constant 0 : i32
    %5 = vector.broadcast %c0_i32 : i32 to vector<1x3xi32>
    %6 = arith.addi %4, %5 : vector<1x3xi32>
    %7 = vector.broadcast %3 : vector<8x1xf32> to vector<8x3xf32>
    %8 = arith.cmpf oeq, %1, %7 : vector<8x3xf32>
    %c2_i32 = arith.constant 2 : i32
    %9 = vector.shape_cast %6 : vector<1x3xi32> to vector<1x3xi32>
    %10 = vector.broadcast %9 : vector<1x3xi32> to vector<8x3xi32>
    %11 = vector.broadcast %c2_i32 : i32 to vector<8x3xi32>
    %12 = arith.select %8, %10, %11 : vector<8x3xi1>, vector<8x3xi32>
    %cst_1 = arith.constant dense<2147483647> : vector<8xi32>
    %13 = vector.multi_reduction <minsi>, %12, %cst_1 [1] : vector<8x3xi32> to vector<8xi32>
    %14 = vector.shape_cast %13 : vector<8xi32> to vector<8x1xi32>
    %15 = vector.extract_strided_slice %0 {offsets = [0, 2], sizes = [8, 3], strides = [1, 1]} : vector<8x16xf32> to vector<8x3xf32>
    %cst_2 = arith.constant dense<0xFF800000> : vector<8xf32>
    %16 = vector.multi_reduction <maximumf>, %15, %cst_2 [1] : vector<8x3xf32> to vector<8xf32>
    %17 = vector.shape_cast %16 : vector<8xf32> to vector<8x1xf32>
    %18 = tpu.iota {dimensions = array<i32: 1>} : vector<1x3xi32>
    %c2_i32_3 = arith.constant 2 : i32
    %19 = vector.broadcast %c2_i32_3 : i32 to vector<1x3xi32>
    %20 = arith.addi %18, %19 : vector<1x3xi32>
    %21 = vector.broadcast %17 : vector<8x1xf32> to vector<8x3xf32>
    %22 = arith.cmpf oeq, %15, %21 : vector<8x3xf32>
    %c4_i32 = arith.constant 4 : i32
    %23 = vector.shape_cast %20 : vector<1x3xi32> to vector<1x3xi32>
    %24 = vector.broadcast %23 : vector<1x3xi32> to vector<8x3xi32>
    %25 = vector.broadcast %c4_i32 : i32 to vector<8x3xi32>
    %26 = arith.select %22, %24, %25 : vector<8x3xi1>, vector<8x3xi32>
    %cst_4 = arith.constant dense<2147483647> : vector<8xi32>
    %27 = vector.multi_reduction <minsi>, %26, %cst_4 [1] : vector<8x3xi32> to vector<8xi32>
    %28 = vector.shape_cast %27 : vector<8xi32> to vector<8x1xi32>
    %29 = vector.extract_strided_slice %0 {offsets = [0, 4], sizes = [8, 3], strides = [1, 1]} : vector<8x16xf32> to vector<8x3xf32>
    %cst_5 = arith.constant dense<0xFF800000> : vector<8xf32>
    %30 = vector.multi_reduction <maximumf>, %29, %cst_5 [1] : vector<8x3xf32> to vector<8xf32>
    %31 = vector.shape_cast %30 : vector<8xf32> to vector<8x1xf32>
    %32 = tpu.iota {dimensions = array<i32: 1>} : vector<1x3xi32>
    %c4_i32_6 = arith.constant 4 : i32
    %33 = vector.broadcast %c4_i32_6 : i32 to vector<1x3xi32>
    %34 = arith.addi %32, %33 : vector<1x3xi32>
    %35 = vector.broadcast %31 : vector<8x1xf32> to vector<8x3xf32>
    %36 = arith.cmpf oeq, %29, %35 : vector<8x3xf32>
    %c6_i32 = arith.constant 6 : i32
    %37 = vector.shape_cast %34 : vector<1x3xi32> to vector<1x3xi32>
    %38 = vector.broadcast %37 : vector<1x3xi32> to vector<8x3xi32>
    %39 = vector.broadcast %c6_i32 : i32 to vector<8x3xi32>
    %40 = arith.select %36, %38, %39 : vector<8x3xi1>, vector<8x3xi32>
    %cst_7 = arith.constant dense<2147483647> : vector<8xi32>
    %41 = vector.multi_reduction <minsi>, %40, %cst_7 [1] : vector<8x3xi32> to vector<8xi32>
    %42 = vector.shape_cast %41 : vector<8xi32> to vector<8x1xi32>
    %43 = vector.extract_strided_slice %0 {offsets = [0, 6], sizes = [8, 4], strides = [1, 1]} : vector<8x16xf32> to vector<8x4xf32>
    %cst_8 = arith.constant dense<0xFF800000> : vector<8xf32>
    %44 = vector.multi_reduction <maximumf>, %43, %cst_8 [1] : vector<8x4xf32> to vector<8xf32>
    %45 = vector.shape_cast %44 : vector<8xf32> to vector<8x1xf32>
    %46 = tpu.iota {dimensions = array<i32: 1>} : vector<1x4xi32>
    %c6_i32_9 = arith.constant 6 : i32
    %47 = vector.broadcast %c6_i32_9 : i32 to vector<1x4xi32>
    %48 = arith.addi %46, %47 : vector<1x4xi32>
    %49 = vector.broadcast %45 : vector<8x1xf32> to vector<8x4xf32>
    %50 = arith.cmpf oeq, %43, %49 : vector<8x4xf32>
    %c9_i32 = arith.constant 9 : i32
    %51 = vector.shape_cast %48 : vector<1x4xi32> to vector<1x4xi32>
    %52 = vector.broadcast %51 : vector<1x4xi32> to vector<8x4xi32>
    %53 = vector.broadcast %c9_i32 : i32 to vector<8x4xi32>
    %54 = arith.select %50, %52, %53 : vector<8x4xi1>, vector<8x4xi32>
    %cst_10 = arith.constant dense<2147483647> : vector<8xi32>
    %55 = vector.multi_reduction <minsi>, %54, %cst_10 [1] : vector<8x4xi32> to vector<8xi32>
    %56 = vector.shape_cast %55 : vector<8xi32> to vector<8x1xi32>
    %57 = vector.extract_strided_slice %0 {offsets = [0, 9], sizes = [8, 3], strides = [1, 1]} : vector<8x16xf32> to vector<8x3xf32>
    %cst_11 = arith.constant dense<0xFF800000> : vector<8xf32>
    %58 = vector.multi_reduction <maximumf>, %57, %cst_11 [1] : vector<8x3xf32> to vector<8xf32>
    %59 = vector.shape_cast %58 : vector<8xf32> to vector<8x1xf32>
    %60 = tpu.iota {dimensions = array<i32: 1>} : vector<1x3xi32>
    %c9_i32_12 = arith.constant 9 : i32
    %61 = vector.broadcast %c9_i32_12 : i32 to vector<1x3xi32>
    %62 = arith.addi %60, %61 : vector<1x3xi32>
    %63 = vector.broadcast %59 : vector<8x1xf32> to vector<8x3xf32>
    %64 = arith.cmpf oeq, %57, %63 : vector<8x3xf32>
    %c11_i32 = arith.constant 11 : i32
    %65 = vector.shape_cast %62 : vector<1x3xi32> to vector<1x3xi32>
    %66 = vector.broadcast %65 : vector<1x3xi32> to vector<8x3xi32>
    %67 = vector.broadcast %c11_i32 : i32 to vector<8x3xi32>
    %68 = arith.select %64, %66, %67 : vector<8x3xi1>, vector<8x3xi32>
    %cst_13 = arith.constant dense<2147483647> : vector<8xi32>
    %69 = vector.multi_reduction <minsi>, %68, %cst_13 [1] : vector<8x3xi32> to vector<8xi32>
    %70 = vector.shape_cast %69 : vector<8xi32> to vector<8x1xi32>
    %71 = vector.extract_strided_slice %0 {offsets = [0, 11], sizes = [8, 3], strides = [1, 1]} : vector<8x16xf32> to vector<8x3xf32>
    %cst_14 = arith.constant dense<0xFF800000> : vector<8xf32>
    %72 = vector.multi_reduction <maximumf>, %71, %cst_14 [1] : vector<8x3xf32> to vector<8xf32>
    %73 = vector.shape_cast %72 : vector<8xf32> to vector<8x1xf32>
    %74 = tpu.iota {dimensions = array<i32: 1>} : vector<1x3xi32>
    %c11_i32_15 = arith.constant 11 : i32
    %75 = vector.broadcast %c11_i32_15 : i32 to vector<1x3xi32>
    %76 = arith.addi %74, %75 : vector<1x3xi32>
    %77 = vector.broadcast %73 : vector<8x1xf32> to vector<8x3xf32>
    %78 = arith.cmpf oeq, %71, %77 : vector<8x3xf32>
    %c13_i32 = arith.constant 13 : i32
    %79 = vector.shape_cast %76 : vector<1x3xi32> to vector<1x3xi32>
    %80 = vector.broadcast %79 : vector<1x3xi32> to vector<8x3xi32>
    %81 = vector.broadcast %c13_i32 : i32 to vector<8x3xi32>
    %82 = arith.select %78, %80, %81 : vector<8x3xi1>, vector<8x3xi32>
    %cst_16 = arith.constant dense<2147483647> : vector<8xi32>
    %83 = vector.multi_reduction <minsi>, %82, %cst_16 [1] : vector<8x3xi32> to vector<8xi32>
    %84 = vector.shape_cast %83 : vector<8xi32> to vector<8x1xi32>
    %85 = vector.extract_strided_slice %0 {offsets = [0, 13], sizes = [8, 3], strides = [1, 1]} : vector<8x16xf32> to vector<8x3xf32>
    %cst_17 = arith.constant dense<0xFF800000> : vector<8xf32>
    %86 = vector.multi_reduction <maximumf>, %85, %cst_17 [1] : vector<8x3xf32> to vector<8xf32>
    %87 = vector.shape_cast %86 : vector<8xf32> to vector<8x1xf32>
    %88 = tpu.iota {dimensions = array<i32: 1>} : vector<1x3xi32>
    %c13_i32_18 = arith.constant 13 : i32
    %89 = vector.broadcast %c13_i32_18 : i32 to vector<1x3xi32>
    %90 = arith.addi %88, %89 : vector<1x3xi32>
    %91 = vector.broadcast %87 : vector<8x1xf32> to vector<8x3xf32>
    %92 = arith.cmpf oeq, %85, %91 : vector<8x3xf32>
    %c15_i32 = arith.constant 15 : i32
    %93 = vector.shape_cast %90 : vector<1x3xi32> to vector<1x3xi32>
    %94 = vector.broadcast %93 : vector<1x3xi32> to vector<8x3xi32>
    %95 = vector.broadcast %c15_i32 : i32 to vector<8x3xi32>
    %96 = arith.select %92, %94, %95 : vector<8x3xi1>, vector<8x3xi32>
    %cst_19 = arith.constant dense<2147483647> : vector<8xi32>
    %97 = vector.multi_reduction <minsi>, %96, %cst_19 [1] : vector<8x3xi32> to vector<8xi32>
    %98 = vector.shape_cast %97 : vector<8xi32> to vector<8x1xi32>
    %99 = tpu.concatenate %3, %17, %31, %45, %59, %73, %87 in 1 : vector<8x1xf32>, vector<8x1xf32>, vector<8x1xf32>, vector<8x1xf32>, vector<8x1xf32>, vector<8x1xf32>, vector<8x1xf32> -> vector<8x7xf32>
    %100 = tpu.concatenate %14, %28, %42, %56, %70, %84, %98 in 1 : vector<8x1xi32>, vector<8x1xi32>, vector<8x1xi32>, vector<8x1xi32>, vector<8x1xi32>, vector<8x1xi32>, vector<8x1xi32> -> vector<8x7xi32>
    %101 = tpu.transpose %100, [1, 0] : vector<8x7xi32> -> vector<7x8xi32>
    %c0_20 = arith.constant 0 : index
    %c0_21 = arith.constant 0 : index
    %102 = vector.load %arg3[%c0_20, %c0_21] : memref<7x8xi32, #tpu.memory_space<vmem>>, vector<7x8xi32>
    tpu.vector_store %arg3[%c0_20, %c0_21], %101 {strides = array<i32>} : memref<7x8xi32, #tpu.memory_space<vmem>>, vector<7x8xi32>,
    %103 = tpu.transpose %99, [1, 0] : vector<8x7xf32> -> vector<7x8xf32>
    %cst_22 = arith.constant dense<0xFF800000> : vector<8xf32>
    %104 = vector.multi_reduction <maximumf>, %103, %cst_22 [0] : vector<7x8xf32> to vector<8xf32>
    %105 = vector.shape_cast %104 : vector<8xf32> to vector<1x8xf32>
    %c0_23 = arith.constant 0 : index
    %c0_24 = arith.constant 0 : index
    %106 = vector.load %arg2[%c0_23, %c0_24] : memref<1x8xf32, #tpu.memory_space<vmem>>, vector<1x8xf32>
    tpu.vector_store %arg2[%c0_23, %c0_24], %105 {strides = array<i32>} : memref<1x8xf32, #tpu.memory_space<vmem>>, vector<1x8xf32>,
    return
  }
  func.func @transform_0(%arg0: i32) -> (i32, i32) {
    %c0_i32 = arith.constant 0 : i32
    %c0_i32_0 = arith.constant 0 : i32
    return %arg0, %c0_i32 : i32, i32
  }
  func.func @transform_1(%arg0: i32) -> (i32, i32) {
    %c0_i32 = arith.constant 0 : i32
    %c0_i32_0 = arith.constant 0 : i32
    return %c0_i32, %arg0 : i32, i32
  }
  func.func @transform_2(%arg0: i32) -> (i32, i32) {
    %c0_i32 = arith.constant 0 : i32
    %c0_i32_0 = arith.constant 0 : i32
    return %c0_i32, %arg0 : i32, i32
  }
}

</mosaic_0001>

<llo_original>
// kernel: tpu_custom_call.1
$region0: #{tpu_custom_call.1}
  #allocation0 [shape = 'u32[]', space=smem, size = 0x4, offset = 0x4, fixed_abs, tag = 'smem constant byte address 0x4 - core index']
  #allocation1 [shape = 'u32[144,128]{1,0:T(1,128)}', space=vmem, size = 0x12000, scoped, tag = 'internal scratch']
  %s0 = inlined_call_operand.hbm [shape: f32[8,16], index: 0, kind: input, shape index: {}]
  %s1 = inlined_call_operand.hbm [shape: f32[1,8], index: 1, kind: output, shape index: {0}]
  %s2 = inlined_call_operand.hbm [shape: s32[7,8], index: 2, kind: output, shape index: {1}]
  %3 = xla_tuple %s1, %s2
  %s4 = sld [smem:[#allocation0]]
  $region26: #{tpu_custom_call.1} parent=0
    _
  %s6 = ssub.s32 1, %s4
  %s7 = scalar_select 0, %s6, %s4
  $region1: #{tpu_custom_call.1} parent=0
    #allocation2 [shape = 'u8[4096]{0}', space=vmem, size = 0x1000, scoped, tag = 'input window, operand 0, single buffered']
    #allocation3 [shape = 's32[1]{0}', space=sflag, size = 0x4, scoped, tag = 'scoped memory for tpu_custom_call.1']
    #allocation4 [shape = 's32[1]{0}', space=sflag, size = 0x4, scoped, tag = 'scoped memory for tpu_custom_call.1']
    #allocation5 [shape = 'u8[512]{0}', space=vmem, size = 0x400, scoped, tag = 'output window, operand 0, single buffered']
    #allocation6 [shape = 'u8[4096]{0}', space=vmem, size = 0x1000, scoped, tag = 'output window, operand 1, single buffered']
    #allocation7 [shape = 's32[1]{0}', space=sflag, size = 0x4, scoped, tag = 'scoped memory for tpu_custom_call.1']
    %8 = vsyncpa [#allocation3], 0
    %9 = vsyncpa [#allocation4], 0
    %10 = vsyncpa [#allocation7], 0
    // Predicated region
    $region2: #{tpu_custom_call.1} parent=1 // pred_check
      _
    $region3: #{tpu_custom_call.1} parent=1 // pred_check_branch
      %12 = sbr.rel (0) target = $region5
    $region4: #{tpu_custom_call.1} parent=1 // pred_region
      %s14 = ssub.s32 128, 128
      %15 = vsyncadd [#allocation3], %s14
      %s17 = sshll.u32 [#allocation2], 4
      %s18 = int_to_ptr.vmem [resolvable:$true] %s17
      %20 = dma.hbm_to_vmem [thread:$0]  %s0, 128, %s18, [#allocation3]
    $region5: #{tpu_custom_call.1} parent=1 // pred_fallthru
      _
    // Predicated region
    $region6: #{tpu_custom_call.1} parent=1 // pred_check
      _
    $region7: #{tpu_custom_call.1} parent=1 // pred_check_branch
      %22 = sbr.rel (0) target = $region9
    $region8: #{tpu_custom_call.1} parent=1 // pred_region
      %23 = dma.done [#allocation3], 128
    $region9: #{tpu_custom_call.1} parent=1 // pred_fallthru
      _
    %v24 = vld [vmem:[#allocation2] sm:$0xff]
    %vm25 = vcmask 23552
    %v26 = vsel %vm25, %v24, -inf
    %27 = vmax.xlane.f32.xlu0 %v26
    %v28 = vpop.xlane.xlu0 %27
    %v29 = vlaneseq
    %v30 = vand.u32 %v29, 127
    %vm31 = vcmp.eq.f32.partialorder %v24, %v28
    %v32 = vsel %vm31, %v30, 2
    %v33 = vsel %vm25, %v32, 2147483647
    %v34 = vand.u32 %v33, 65535
    %v35 = vshra.s32 %v33, 16
    %v36 = vcvt.s32.f32 %v34
    %v37 = vcvt.s32.f32 %v35
    %38 = vmin.xlane.f32.xlu0 %v37
    %v39 = vpop.xlane.xlu0 %38
    %vm40 = vcmp.eq.f32.partialorder %v37, %v39
    %v41 = vsel %vm40, %v36, inf
    %42 = vmin.xlane.f32.xlu0 %v41
    %v43 = vpop.xlane.xlu0 %42
    %v44 = vcvt.f32.s32 %v43
    %v45 = vcvt.f32.s32 %v39
    %v46 = vshll.u32 %v45, 16
    %v47 = vadd.s32 %v46, %v44
    %vm48 = vcmask 39952
    %v49 = vsel %vm48, %v24, -inf
    %50 = vmax.xlane.f32.xlu0 %v49
    %v51 = vpop.xlane.xlu0 %50
    %v52 = vadd.s32 %v30, 2
    %vm53 = vcmp.eq.f32.partialorder %v24, %v51
    %54 = vrot.lane.b32.xlu0 %v52, 2
    %v55 = vpop.permute.xlu0 %54
    %v56 = vsel %vm53, %v55, 4
    %v57 = vsel %vm48, %v56, 2147483647
    %v58 = vand.u32 %v57, 65535
    %v59 = vshra.s32 %v57, 16
    %v60 = vcvt.s32.f32 %v58
    %v61 = vcvt.s32.f32 %v59
    %62 = vmin.xlane.f32.xlu0 %v61
    %v63 = vpop.xlane.xlu0 %62
    %vm64 = vcmp.eq.f32.partialorder %v61, %v63
    %v65 = vsel %vm64, %v60, inf
    %66 = vmin.xlane.f32.xlu0 %v65
    %v67 = vpop.xlane.xlu0 %66
    %v68 = vcvt.f32.s32 %v67
    %v69 = vcvt.f32.s32 %v63
    %v70 = vshll.u32 %v69, 16
    %v71 = vadd.s32 %v70, %v68
    %vm72 = vcmask 56352
    %v73 = vsel %vm72, %v24, -inf
    %74 = vmax.xlane.f32.xlu0 %v73
    %v75 = vpop.xlane.xlu0 %74
    %v76 = vadd.s32 %v30, 4
    %vm77 = vcmp.eq.f32.partialorder %v24, %v75
    %78 = vrot.lane.b32.xlu0 %v76, 4
    %v79 = vpop.permute.xlu0 %78
    %v80 = vsel %vm77, %v79, 6
    %v81 = vsel %vm72, %v80, 2147483647
    %v82 = vand.u32 %v81, 65535
    %v83 = vshra.s32 %v81, 16
    %v84 = vcvt.s32.f32 %v82
    %v85 = vcvt.s32.f32 %v83
    %86 = vmin.xlane.f32.xlu0 %v85
    %v87 = vpop.xlane.xlu0 %86
    %vm88 = vcmp.eq.f32.partialorder %v85, %v87
    %v89 = vsel %vm88, %v84, inf
    %90 = vmin.xlane.f32.xlu0 %v89
    %v91 = vpop.xlane.xlu0 %90
    %v92 = vcvt.f32.s32 %v91
    %v93 = vcvt.f32.s32 %v87
    %v94 = vshll.u32 %v93, 16
    %v95 = vadd.s32 %v94, %v92
    %vm96 = vcmask 80944
    %v97 = vsel %vm96, %v24, -inf
    %98 = vmax.xlane.f32.xlu0 %v97
    %v99 = vpop.xlane.xlu0 %98
    %v100 = vadd.s32 %v30, 6
    %vm101 = vcmp.eq.f32.partialorder %v24, %v99
    %102 = vrot.lane.b32.xlu0 %v100, 6
    %v103 = vpop.permute.xlu0 %102
    %v104 = vsel %vm101, %v103, 9
    %v105 = vsel %vm96, %v104, 2147483647
    %v106 = vand.u32 %v105, 65535
    %v107 = vshra.s32 %v105, 16
    %v108 = vcvt.s32.f32 %v106
    %v109 = vcvt.s32.f32 %v107
    %110 = vmin.xlane.f32.xlu0 %v109
    %v111 = vpop.xlane.xlu0 %110
    %vm112 = vcmp.eq.f32.partialorder %v109, %v111
    %v113 = vsel %vm112, %v108, inf
    %114 = vmin.xlane.f32.xlu0 %v113
    %v115 = vpop.xlane.xlu0 %114
    %v116 = vcvt.f32.s32 %v115
    %v117 = vcvt.f32.s32 %v111
    %v118 = vshll.u32 %v117, 16
    %v119 = vadd.s32 %v118, %v116
    %vm120 = vcmask 97352
    %v121 = vsel %vm120, %v24, -inf
    %122 = vmax.xlane.f32.xlu0 %v121
    %v123 = vpop.xlane.xlu0 %122
    %v124 = vadd.s32 %v30, 9
    %vm125 = vcmp.eq.f32.partialorder %v24, %v123
    %126 = vrot.lane.b32.xlu0 %v124, 9
    %v127 = vpop.permute.xlu0 %126
    %v128 = vsel %vm125, %v127, 11
    %v129 = vsel %vm120, %v128, 2147483647
    %v130 = vand.u32 %v129, 65535
    %v131 = vshra.s32 %v129, 16
    %v132 = vcvt.s32.f32 %v130
    %v133 = vcvt.s32.f32 %v131
    %134 = vmin.xlane.f32.xlu0 %v133
    %v135 = vpop.xlane.xlu0 %134
    %vm136 = vcmp.eq.f32.partialorder %v133, %v135
    %v137 = vsel %vm136, %v132, inf
    %138 = vmin.xlane.f32.xlu0 %v137
    %v139 = vpop.xlane.xlu0 %138
    %v140 = vcvt.f32.s32 %v139
    %v141 = vcvt.f32.s32 %v135
    %v142 = vshll.u32 %v141, 16
    %v143 = vadd.s32 %v142, %v140
    %vm144 = vcmask 113752
    %v145 = vsel %vm144, %v24, -inf
    %146 = vmax.xlane.f32.xlu0 %v145
    %v147 = vpop.xlane.xlu0 %146
    %v148 = vadd.s32 %v30, 11
    %vm149 = vcmp.eq.f32.partialorder %v24, %v147
    %150 = vrot.lane.b32.xlu0 %v148, 11
    %v151 = vpop.permute.xlu0 %150
    %v152 = vsel %vm149, %v151, 13
    %v153 = vsel %vm144, %v152, 2147483647
    %v154 = vand.u32 %v153, 65535
    %v155 = vshra.s32 %v153, 16
    %v156 = vcvt.s32.f32 %v154
    %v157 = vcvt.s32.f32 %v155
    %158 = vmin.xlane.f32.xlu0 %v157
    %v159 = vpop.xlane.xlu0 %158
    %vm160 = vcmp.eq.f32.partialorder %v157, %v159
    %v161 = vsel %vm160, %v156, inf
    %162 = vmin.xlane.f32.xlu0 %v161
    %v163 = vpop.xlane.xlu0 %162
    %v164 = vcvt.f32.s32 %v163
    %v165 = vcvt.f32.s32 %v159
    %v166 = vshll.u32 %v165, 16
    %v167 = vadd.s32 %v166, %v164
    %vm168 = vcmask 130152
    %v169 = vsel %vm168, %v24, -inf
    %170 = vmax.xlane.f32.xlu0 %v169
    %v171 = vpop.xlane.xlu0 %170
    %v172 = vadd.s32 %v30, 13
    %vm173 = vcmp.eq.f32.partialorder %v24, %v171
    %174 = vrot.lane.b32.xlu0 %v172, 13
    %v175 = vpop.permute.xlu0 %174
    %v176 = vsel %vm173, %v175, 15
    %v177 = vsel %vm168, %v176, 2147483647
    %v178 = vand.u32 %v177, 65535
    %v179 = vshra.s32 %v177, 16
    %v180 = vcvt.s32.f32 %v178
    %v181 = vcvt.s32.f32 %v179
    %182 = vmin.xlane.f32.xlu0 %v181
    %v183 = vpop.xlane.xlu0 %182
    %vm184 = vcmp.eq.f32.partialorder %v181, %v183
    %v185 = vsel %vm184, %v180, inf
    %186 = vmin.xlane.f32.xlu0 %v185
    %v187 = vpop.xlane.xlu0 %186
    %v188 = vcvt.f32.s32 %v187
    %v189 = vcvt.f32.s32 %v183
    %v190 = vshll.u32 %v189, 16
    %v191 = vadd.s32 %v190, %v188
    %vm192 = vcmask 7168
    %v193 = vsel %vm192, %v28, %v51
    %vm194 = vcmask 15360
    %v195 = vsel %vm194, %v193, %v75
    %v196 = vsel %vm25, %v195, %v99
    %vm197 = vcmask 31744
    %v198 = vsel %vm197, %v196, %v123
    %vm199 = vcmask 39936
    %v200 = vsel %vm199, %v198, %v147
    %vm201 = vcmask 48128
    %v202 = vsel %vm201, %v200, %v171
    %v203 = vsel %vm192, %v47, %v71
    %v204 = vsel %vm194, %v203, %v95
    %v205 = vsel %vm25, %v204, %v119
    %v206 = vsel %vm197, %v205, %v143
    %v207 = vsel %vm199, %v206, %v167
    %v208 = vsel %vm201, %v207, %v191
    %209 = vxpose.xlu0.b32.start [1/16] %v208, 128
    %210 = vxpose.xlu0.b32.cont [2/16] 0, 128
    %211 = vxpose.xlu0.b32.cont [3/16] 0, 128
    %212 = vxpose.xlu0.b32.cont [4/16] 0, 128
    %213 = vxpose.xlu0.b32.cont [5/16] 0, 128
    %214 = vxpose.xlu0.b32.cont [6/16] 0, 128
    %215 = vxpose.xlu0.b32.cont [7/16] 0, 128
    %216 = vxpose.xlu0.b32.cont [8/16] 0, 128
    %217 = vxpose.xlu0.b32.cont [9/16] 0, 128
    %218 = vxpose.xlu0.b32.cont [10/16] 0, 128
    %219 = vxpose.xlu0.b32.cont [11/16] 0, 128
    %220 = vxpose.xlu0.b32.cont [12/16] 0, 128
    %221 = vxpose.xlu0.b32.cont [13/16] 0, 128
    %222 = vxpose.xlu0.b32.cont [14/16] 0, 128
    %223 = vxpose.xlu0.b32.cont [15/16] 0, 128
    %224 = vxpose.xlu0.b32.end [16/16] 0, 128
    %v225 = vpop.trf.xlu0
    %v226 = vpop.trf.xlu0
    %v227 = vpop.trf.xlu0
    %v228 = vpop.trf.xlu0
    %v229 = vpop.trf.xlu0
    %v230 = vpop.trf.xlu0
    %v231 = vpop.trf.xlu0
    %v232 = vpop.trf.xlu0
    %v233 = vpop.trf.xlu0
    %v234 = vpop.trf.xlu0
    %v235 = vpop.trf.xlu0
    %v236 = vpop.trf.xlu0
    %v237 = vpop.trf.xlu0
    %v238 = vpop.trf.xlu0
    %v239 = vpop.trf.xlu0
    %v240 = vpop.trf.xlu0
    %vm241 = vcmask 63488
    %242 = vst.msk [vmem:[#allocation6] sm:$0x7f] %vm241, %v225
    %243 = vxpose.xlu0.b32.start [1/16] %v202, 128
    %244 = vxpose.xlu0.b32.cont [2/16] 0.0, 128
    %245 = vxpose.xlu0.b32.cont [3/16] 0.0, 128
    %246 = vxpose.xlu0.b32.cont [4/16] 0.0, 128
    %247 = vxpose.xlu0.b32.cont [5/16] 0.0, 128
    %248 = vxpose.xlu0.b32.cont [6/16] 0.0, 128
    %249 = vxpose.xlu0.b32.cont [7/16] 0.0, 128
    %250 = vxpose.xlu0.b32.cont [8/16] 0.0, 128
    %251 = vxpose.xlu0.b32.cont [9/16] 0.0, 128
    %252 = vxpose.xlu0.b32.cont [10/16] 0.0, 128
    %253 = vxpose.xlu0.b32.cont [11/16] 0.0, 128
    %254 = vxpose.xlu0.b32.cont [12/16] 0.0, 128
    %255 = vxpose.xlu0.b32.cont [13/16] 0.0, 128
    %256 = vxpose.xlu0.b32.cont [14/16] 0.0, 128
    %257 = vxpose.xlu0.b32.cont [15/16] 0.0, 128
    %258 = vxpose.xlu0.b32.end [16/16] 0.0, 128
    %v259 = vpop.trf.xlu0
    %v260 = vpop.trf.xlu0
    %v261 = vpop.trf.xlu0
    %v262 = vpop.trf.xlu0
    %v263 = vpop.trf.xlu0
    %v264 = vpop.trf.xlu0
    %v265 = vpop.trf.xlu0
    %v266 = vpop.trf.xlu0
    %v267 = vpop.trf.xlu0
    %v268 = vpop.trf.xlu0
    %v269 = vpop.trf.xlu0
    %v270 = vpop.trf.xlu0
    %v271 = vpop.trf.xlu0
    %v272 = vpop.trf.xlu0
    %v273 = vpop.trf.xlu0
    %v274 = vpop.trf.xlu0
    %v275 = vsel %vm241, %v259, -inf
    %v276 = vrot.slane %v275, 4
    %v277 = vmax.f32 %v275, %v276
    %v278 = vrot.slane %v277, 2
    %v279 = vmax.f32 %v277, %v278
    %v280 = vrot.slane %v279, 1
    %v281 = vmax.f32 %v279, %v280
    %vm282 = vcmask 57344
    %283 = vst.msk [vmem:[#allocation5] sm:$0x1] %vm282, %v281
    // Predicated region
    $region10: #{tpu_custom_call.1} parent=1 // pred_check
      _
    $region11: #{tpu_custom_call.1} parent=1 // pred_check_branch
      %285 = sbr.rel (0) target = $region13
    $region12: #{tpu_custom_call.1} parent=1 // pred_region
      %s287 = ssub.s32 16, 16
      %288 = vsyncadd [#allocation4], %s287
      %s290 = sshll.u32 [#allocation5], 4
      %s291 = int_to_ptr.vmem [resolvable:$true] %s290
      %293 = dma.vmem_to_hbm [thread:$0]  %s291, 16, %s1, [#allocation4]
    $region13: #{tpu_custom_call.1} parent=1 // pred_fallthru
      _
    // Predicated region
    $region14: #{tpu_custom_call.1} parent=1 // pred_check
      _
    $region15: #{tpu_custom_call.1} parent=1 // pred_check_branch
      %295 = sbr.rel (0) target = $region17
    $region16: #{tpu_custom_call.1} parent=1 // pred_region
      %s297 = ssub.s32 128, 128
      %298 = vsyncadd [#allocation7], %s297
      %s300 = sshll.u32 [#allocation6], 4
      %s301 = int_to_ptr.vmem [resolvable:$true] %s300
      %303 = dma.vmem_to_hbm [thread:$0]  %s301, 128, %s2, [#allocation7]
    $region17: #{tpu_custom_call.1} parent=1 // pred_fallthru
      _
    // Predicated region
    $region18: #{tpu_custom_call.1} parent=1 // pred_check
      _
    $region19: #{tpu_custom_call.1} parent=1 // pred_check_branch
      %305 = sbr.rel (0) target = $region21
    $region20: #{tpu_custom_call.1} parent=1 // pred_region
      %306 = dma.done [#allocation4], 16
    $region21: #{tpu_custom_call.1} parent=1 // pred_fallthru
      _
    // Predicated region
    $region22: #{tpu_custom_call.1} parent=1 // pred_check
      _
    $region23: #{tpu_custom_call.1} parent=1 // pred_check_branch
      %308 = sbr.rel (0) target = $region25
    $region24: #{tpu_custom_call.1} parent=1 // pred_region
      %309 = dma.done [#allocation7], 128
    $region25: #{tpu_custom_call.1} parent=1 // pred_fallthru
      _
    %310 = vsyncpa [#allocation3], 1
    %311 = vsyncpa [#allocation4], 1
    %312 = vsyncpa [#allocation7], 1

</llo_original>
